<compile_context>
chip_gen: v6e
topology: v6e:2x2x1
jax: 0.10.0
libtpu: 0.0.40
codegen_flags: <defaults>
</compile_context>

<pallas_src>
import math
import jax
import jax.numpy as jnp
from jax.experimental import pallas as pl
from jax.experimental.pallas import tpu as pltpu


def make_encoder_kernel(TB, K, D, DQ, DV, H, mxu_dtype):
    HQ = H * DQ
    HV = H * DV
    scale = 1.0 / math.sqrt(DQ)

    def kernel(x_ref, wqkv_ref, bqkv_ref, wo_ref, bo_ref, gamma_ref, beta_ref, o_ref):
        # x block: (TB, K, D) -> flatten batch*seq rows for the projection matmul.
        xf = x_ref[...].reshape(TB * K, D).astype(jnp.float32)

        # Fused Q|K|V projection: one (TB*K, D) x (D, 2*HQ+HV) MXU matmul.
        qkv = jnp.dot(xf.astype(mxu_dtype), wqkv_ref[...].astype(mxu_dtype),
                      preferred_element_type=jnp.float32) + bqkv_ref[0]      # (TB*K, 2HQ+HV)
        qkv3 = qkv.reshape(TB, K, 2 * HQ + HV)

        # Stack heads along the leading (batch) axis so attention is ONE batched
        # dot_general over H*TB instead of H tiny 2-D matmuls.
        q_h = jnp.concatenate(
            [qkv3[:, :, h * DQ:(h + 1) * DQ] for h in range(H)], axis=0)     # (H*TB, K, DQ)
        k_h = jnp.concatenate(
            [qkv3[:, :, HQ + h * DQ:HQ + (h + 1) * DQ] for h in range(H)], axis=0)
        v_h = jnp.concatenate(
            [qkv3[:, :, 2 * HQ + h * DV:2 * HQ + (h + 1) * DV] for h in range(H)], axis=0)

        # Scores: contract DQ, batch over H*TB — transpose expressed via dim numbers.
        s = jax.lax.dot_general(
            q_h.astype(mxu_dtype), k_h.astype(mxu_dtype),
            dimension_numbers=(((2,), (2,)), ((0,), (0,))),
            preferred_element_type=jnp.float32) * scale                      # (H*TB, K, K)

        # Numerically-stable softmax; denominator reciprocal on the EUP.
        s_max = jnp.max(s, axis=-1, keepdims=True)
        e = jnp.exp(s - s_max)
        p = e * pl.reciprocal(jnp.sum(e, axis=-1, keepdims=True), approx=True)

        # Attention values: one batched dot_general.
        o_h = jax.lax.dot_general(
            p.astype(mxu_dtype), v_h.astype(mxu_dtype),
            dimension_numbers=(((2,), (1,)), ((0,), (0,))),
            preferred_element_type=jnp.float32)                              # (H*TB, K, DV)

        # Back to (TB*K, H*DV) with head-major columns (matches wo row layout).
        attn = jnp.concatenate(
            [o_h[h * TB:(h + 1) * TB].reshape(TB * K, DV) for h in range(H)], axis=-1)

        # Output projection.
        out = jnp.dot(attn.astype(mxu_dtype), wo_ref[...].astype(mxu_dtype),
                      preferred_element_type=jnp.float32) + bo_ref[0]        # (TB*K, D)

        # Dropout (eval) -> identity; residual + LayerNorm over last dim (f32).
        y = xf + out
        mu = jnp.mean(y, axis=-1, keepdims=True)
        var = jnp.mean((y - mu) ** 2, axis=-1, keepdims=True)
        y_norm = (y - mu) * jax.lax.rsqrt(var + 1e-5)
        y_out = y_norm * gamma_ref[0] + beta_ref[0]

        o_ref[...] = y_out.reshape(TB, K, D).astype(o_ref.dtype)

    return kernel


def _pick_tb(batch, seq):
    """Batch elements folded per grid step: grow TB*K toward a full tile of rows,
    but keep >= 2 grid steps when possible so v7x's two TensorCores both get work."""
    max_tb = max(1, 256 // max(seq, 1))
    best = 1
    for tb in range(1, batch + 1):
        if batch % tb != 0 or tb > max_tb:
            continue
        if batch // tb >= 2 or batch == 1:
            best = tb
    return best


def encoder_forward(x, params, *, d_q, d_v, n_heads, tb=None, mxu_dtype=jnp.float32):
    """x: (B, K, D) float32. Returns (B, K, D)."""
    B, K, D = x.shape
    wq, bq, wk, bk, wv, bv, wo, bo, gamma, beta = params

    # Fuse Q/K/V projection weights -> single (D, H*(2*DQ+DV)) matmul operand.
    wqkv = jnp.concatenate([wq, wk, wv], axis=1)
    bqkv = jnp.concatenate([bq, bk, bv], axis=1)

    TB = _pick_tb(B, K) if tb is None else tb
    assert B % TB == 0, "batch must be divisible by the fold factor TB"

    kernel = make_encoder_kernel(TB, K, D, d_q, d_v, n_heads, mxu_dtype)

    full = lambda a: pl.BlockSpec(a.shape, lambda b: (0,) * a.ndim)

    return pl.pallas_call(
        kernel,
        out_shape=jax.ShapeDtypeStruct((B, K, D), x.dtype),
        grid_spec=pltpu.PrefetchScalarGridSpec(
            num_scalar_prefetch=0,
            grid=(B // TB,),
            in_specs=[
                pl.BlockSpec((TB, K, D), lambda b: (b, 0, 0)),   # x
                full(wqkv), full(bqkv),
                full(wo), full(bo),
                full(gamma), full(beta),
            ],
            out_specs=pl.BlockSpec((TB, K, D), lambda b: (b, 0, 0)),
        ),
        compiler_params=pltpu.CompilerParams(
            dimension_semantics=("parallel",)),
    )(x, wqkv, bqkv, wo, bo, gamma, beta)


def init_params(key, d_model, d_q, d_v, n_heads):
    """Deterministic synthetic parameter init (shapes match the nn.Module)."""
    ks = jax.random.split(key, 8)
    s = 0.1
    wq = s * jax.random.normal(ks[0], (d_model, d_q * n_heads), jnp.float32)
    bq = s * jax.random.normal(ks[1], (1, d_q * n_heads), jnp.float32)
    wk = s * jax.random.normal(ks[2], (d_model, d_q * n_heads), jnp.float32)
    bk = s * jax.random.normal(ks[3], (1, d_q * n_heads), jnp.float32)
    wv = s * jax.random.normal(ks[4], (d_model, d_v * n_heads), jnp.float32)
    bv = s * jax.random.normal(ks[5], (1, d_v * n_heads), jnp.float32)
    wo = s * jax.random.normal(ks[6], (d_v * n_heads, d_model), jnp.float32)
    bo = s * jax.random.normal(ks[7], (1, d_model), jnp.float32)
    gamma = jnp.ones((1, d_model), jnp.float32)   # LayerNorm weight
    beta = jnp.zeros((1, d_model), jnp.float32)   # LayerNorm bias
    return (wq, bq, wk, bk, wv, bv, wo, bo, gamma, beta)


def encoder_reference(x, params, *, d_q, d_v, n_heads):
    """Pure-JAX reference for correctness check."""
    wq, bq, wk, bk, wv, bv, wo, bo, gamma, beta = params
    B, K, D = x.shape
    qm = x @ wq + bq[0]
    km = x @ wk + bk[0]
    vm = x @ wv + bv[0]
    qm = qm.reshape(B, K, n_heads, d_q).transpose(0, 2, 1, 3)
    km = km.reshape(B, K, n_heads, d_q).transpose(0, 2, 1, 3)
    vm = vm.reshape(B, K, n_heads, d_v).transpose(0, 2, 1, 3)
    s = jnp.einsum("bhqd,bhkd->bhqk", qm, km) / math.sqrt(d_q)
    p = jax.nn.softmax(s, axis=-1)
    attn = jnp.einsum("bhqk,bhkd->bhqd", p, vm)
    attn = attn.transpose(0, 2, 1, 3).reshape(B, K, n_heads * d_v)
    out = attn @ wo + bo[0]
    y = x + out
    mu = jnp.mean(y, axis=-1, keepdims=True)
    var = jnp.mean((y - mu) ** 2, axis=-1, keepdims=True)
    return (y - mu) * jax.lax.rsqrt(var + 1e-5) * gamma[0] + beta[0]


if __name__ == "__main__":
    d_model, d_q, d_v, n_heads = 32, 8, 8, 4
    batch, seq = 2, 8

    key = jax.random.PRNGKey(0)
    kx, kp = jax.random.split(key)
    x = jax.random.normal(kx, (batch, seq, d_model), jnp.float32)
    params = init_params(kp, d_model, d_q, d_v, n_heads)

    out = encoder_forward(x, params, d_q=d_q, d_v=d_v, n_heads=n_heads)
    out = jax.block_until_ready(out)

    ref = encoder_reference(x, params, d_q=d_q, d_v=d_v, n_heads=n_heads)
    assert out.shape == (batch, seq, d_model)
    # Tolerance accounts for the EUP approximate reciprocal in the softmax denominator.
    assert jnp.allclose(out, ref, atol=2e-2, rtol=2e-2), "mismatch vs reference"

    print("KERNEL_OK")
</pallas_src>

<mosaic_0001>
module attributes {stable_mosaic.version = 11 : i64} {
  func.func @kernel(%arg0: i32, %arg1: memref<1x8x32xf32, #tpu.memory_space<vmem>>, %arg2: memref<32x96xf32, #tpu.memory_space<vmem>>, %arg3: memref<1x96xf32, #tpu.memory_space<vmem>>, %arg4: memref<32x32xf32, #tpu.memory_space<vmem>>, %arg5: memref<1x32xf32, #tpu.memory_space<vmem>>, %arg6: memref<1x32xf32, #tpu.memory_space<vmem>>, %arg7: memref<1x32xf32, #tpu.memory_space<vmem>>, %arg8: memref<1x8x32xf32, #tpu.memory_space<vmem>>) attributes {dimension_semantics = [#tpu.dimension_semantics<parallel>], iteration_bounds = array<i64: 2>, scalar_prefetch = 0 : i64, scratch_operands = 0 : i64, tpu.core_type = #tpu.core_type<tc>, window_params = [{transform_indices = @transform_0, window_bounds = array<i64: 1, 8, 32>}, {pipeline_mode = #tpu.pipeline_mode<synchronous>, transform_indices = @transform_1, window_bounds = array<i64: 32, 96>}, {pipeline_mode = #tpu.pipeline_mode<synchronous>, transform_indices = @transform_2, window_bounds = array<i64: 1, 96>}, {pipeline_mode = #tpu.pipeline_mode<synchronous>, transform_indices = @transform_3, window_bounds = array<i64: 32, 32>}, {pipeline_mode = #tpu.pipeline_mode<synchronous>, transform_indices = @transform_4, window_bounds = array<i64: 1, 32>}, {pipeline_mode = #tpu.pipeline_mode<synchronous>, transform_indices = @transform_5, window_bounds = array<i64: 1, 32>}, {pipeline_mode = #tpu.pipeline_mode<synchronous>, transform_indices = @transform_6, window_bounds = array<i64: 1, 32>}, {transform_indices = @transform_7, window_bounds = array<i64: 1, 8, 32>}]} {
    %c0 = arith.constant 0 : index
    %c0_0 = arith.constant 0 : index
    %c0_1 = arith.constant 0 : index
    %0 = vector.load %arg1[%c0, %c0_0, %c0_1] : memref<1x8x32xf32, #tpu.memory_space<vmem>>, vector<1x8x32xf32>
    %1 = vector.shape_cast %0 : vector<1x8x32xf32> to vector<8x32xf32>
    %c0_2 = arith.constant 0 : index
    %c0_3 = arith.constant 0 : index
    %2 = vector.load %arg2[%c0_2, %c0_3] : memref<32x96xf32, #tpu.memory_space<vmem>>, vector<32x96xf32>
    %cst = arith.constant dense<0.000000e+00> : vector<8x96xf32>
    %3 = tpu.matmul %1, %2, %cst {dimension_numbers = #tpu.dot_dimension_numbers<[1], [0], [0], [1], [0, 0, 1, 1], [], []>} : vector<8x32xf32>, vector<32x96xf32>, vector<8x96xf32> -> vector<8x96xf32>
    %c0_4 = arith.constant 0 : index
    %c0_5 = arith.constant 0 : index
    %4 = vector.load %arg3[%c0_4, %c0_5] : memref<1x96xf32, #tpu.memory_space<vmem>>, vector<1x96xf32>
    %5 = vector.shape_cast %4 : vector<1x96xf32> to vector<96xf32>
    %6 = vector.shape_cast %5 : vector<96xf32> to vector<1x96xf32>
    %7 = vector.broadcast %6 : vector<1x96xf32> to vector<8x96xf32>
    %8 = arith.addf %3, %7 : vector<8x96xf32>
    %9 = vector.shape_cast %8 : vector<8x96xf32> to vector<1x8x96xf32>
    %10 = vector.extract_strided_slice %9 {offsets = [0, 0, 0], sizes = [1, 8, 8], strides = [1, 1, 1]} : vector<1x8x96xf32> to vector<1x8x8xf32>
    %11 = vector.extract_strided_slice %9 {offsets = [0, 0, 8], sizes = [1, 8, 8], strides = [1, 1, 1]} : vector<1x8x96xf32> to vector<1x8x8xf32>
    %12 = vector.extract_strided_slice %9 {offsets = [0, 0, 16], sizes = [1, 8, 8], strides = [1, 1, 1]} : vector<1x8x96xf32> to vector<1x8x8xf32>
    %13 = vector.extract_strided_slice %9 {offsets = [0, 0, 24], sizes = [1, 8, 8], strides = [1, 1, 1]} : vector<1x8x96xf32> to vector<1x8x8xf32>
    %14 = tpu.concatenate %10, %11, %12, %13 in 0 : vector<1x8x8xf32>, vector<1x8x8xf32>, vector<1x8x8xf32>, vector<1x8x8xf32> -> vector<4x8x8xf32>
    %15 = vector.extract_strided_slice %9 {offsets = [0, 0, 32], sizes = [1, 8, 8], strides = [1, 1, 1]} : vector<1x8x96xf32> to vector<1x8x8xf32>
    %16 = vector.extract_strided_slice %9 {offsets = [0, 0, 40], sizes = [1, 8, 8], strides = [1, 1, 1]} : vector<1x8x96xf32> to vector<1x8x8xf32>
    %17 = vector.extract_strided_slice %9 {offsets = [0, 0, 48], sizes = [1, 8, 8], strides = [1, 1, 1]} : vector<1x8x96xf32> to vector<1x8x8xf32>
    %18 = vector.extract_strided_slice %9 {offsets = [0, 0, 56], sizes = [1, 8, 8], strides = [1, 1, 1]} : vector<1x8x96xf32> to vector<1x8x8xf32>
    %19 = tpu.concatenate %15, %16, %17, %18 in 0 : vector<1x8x8xf32>, vector<1x8x8xf32>, vector<1x8x8xf32>, vector<1x8x8xf32> -> vector<4x8x8xf32>
    %20 = vector.extract_strided_slice %9 {offsets = [0, 0, 64], sizes = [1, 8, 8], strides = [1, 1, 1]} : vector<1x8x96xf32> to vector<1x8x8xf32>
    %21 = vector.extract_strided_slice %9 {offsets = [0, 0, 72], sizes = [1, 8, 8], strides = [1, 1, 1]} : vector<1x8x96xf32> to vector<1x8x8xf32>
    %22 = vector.extract_strided_slice %9 {offsets = [0, 0, 80], sizes = [1, 8, 8], strides = [1, 1, 1]} : vector<1x8x96xf32> to vector<1x8x8xf32>
    %23 = vector.extract_strided_slice %9 {offsets = [0, 0, 88], sizes = [1, 8, 8], strides = [1, 1, 1]} : vector<1x8x96xf32> to vector<1x8x8xf32>
    %24 = tpu.concatenate %20, %21, %22, %23 in 0 : vector<1x8x8xf32>, vector<1x8x8xf32>, vector<1x8x8xf32>, vector<1x8x8xf32> -> vector<4x8x8xf32>
    %cst_6 = arith.constant dense<0.000000e+00> : vector<4x8x8xf32>
    %25 = tpu.matmul %14, %19, %cst_6 {dimension_numbers = #tpu.dot_dimension_numbers<[2], [2], [1], [1], [0, 0, 0, 1, 1, 1], [0], [0]>} : vector<4x8x8xf32>, vector<4x8x8xf32>, vector<4x8x8xf32> -> vector<4x8x8xf32>
    %cst_7 = arith.constant 0.353553385 : f32
    %26 = vector.broadcast %cst_7 : f32 to vector<4x8x8xf32>
    %27 = arith.mulf %25, %26 : vector<4x8x8xf32>
    %cst_8 = arith.constant dense<0xFF800000> : vector<4x8xf32>
    %28 = vector.multi_reduction <maximumf>, %27, %cst_8 [2] : vector<4x8x8xf32> to vector<4x8xf32>
    %29 = vector.shape_cast %28 : vector<4x8xf32> to vector<4x8x1xf32>
    %30 = vector.broadcast %29 : vector<4x8x1xf32> to vector<4x8x8xf32>
    %31 = arith.subf %27, %30 : vector<4x8x8xf32>
    %32 = math.exp %31 : vector<4x8x8xf32>
    %cst_9 = arith.constant dense<0.000000e+00> : vector<4x8xf32>
    %33 = vector.multi_reduction <add>, %32, %cst_9 [2] : vector<4x8x8xf32> to vector<4x8xf32>
    %34 = vector.shape_cast %33 : vector<4x8xf32> to vector<4x8x1xf32>
    %35 = tpu.reciprocal %34 {approx = true} : vector<4x8x1xf32> -> vector<4x8x1xf32>
    %36 = vector.broadcast %35 : vector<4x8x1xf32> to vector<4x8x8xf32>
    %37 = arith.mulf %32, %36 : vector<4x8x8xf32>
    %cst_10 = arith.constant dense<0.000000e+00> : vector<4x8x8xf32>
    %38 = tpu.matmul %37, %24, %cst_10 {dimension_numbers = #tpu.dot_dimension_numbers<[2], [1], [1], [2], [0, 0, 0, 1, 1, 2], [0], [0]>} : vector<4x8x8xf32>, vector<4x8x8xf32>, vector<4x8x8xf32> -> vector<4x8x8xf32>
    %39 = vector.extract_strided_slice %38 {offsets = [0, 0, 0], sizes = [1, 8, 8], strides = [1, 1, 1]} : vector<4x8x8xf32> to vector<1x8x8xf32>
    %40 = vector.shape_cast %39 : vector<1x8x8xf32> to vector<8x8xf32>
    %41 = vector.extract_strided_slice %38 {offsets = [1, 0, 0], sizes = [1, 8, 8], strides = [1, 1, 1]} : vector<4x8x8xf32> to vector<1x8x8xf32>
    %42 = vector.shape_cast %41 : vector<1x8x8xf32> to vector<8x8xf32>
    %43 = vector.extract_strided_slice %38 {offsets = [2, 0, 0], sizes = [1, 8, 8], strides = [1, 1, 1]} : vector<4x8x8xf32> to vector<1x8x8xf32>
    %44 = vector.shape_cast %43 : vector<1x8x8xf32> to vector<8x8xf32>
    %45 = vector.extract_strided_slice %38 {offsets = [3, 0, 0], sizes = [1, 8, 8], strides = [1, 1, 1]} : vector<4x8x8xf32> to vector<1x8x8xf32>
    %46 = vector.shape_cast %45 : vector<1x8x8xf32> to vector<8x8xf32>
    %47 = tpu.concatenate %40, %42, %44, %46 in 1 : vector<8x8xf32>, vector<8x8xf32>, vector<8x8xf32>, vector<8x8xf32> -> vector<8x32xf32>
    %c0_11 = arith.constant 0 : index
    %c0_12 = arith.constant 0 : index
    %48 = vector.load %arg4[%c0_11, %c0_12] : memref<32x32xf32, #tpu.memory_space<vmem>>, vector<32x32xf32>
    %cst_13 = arith.constant dense<0.000000e+00> : vector<8x32xf32>
    %49 = tpu.matmul %47, %48, %cst_13 {dimension_numbers = #tpu.dot_dimension_numbers<[1], [0], [0], [1], [0, 0, 1, 1], [], []>} : vector<8x32xf32>, vector<32x32xf32>, vector<8x32xf32> -> vector<8x32xf32>
    %c0_14 = arith.constant 0 : index
    %c0_15 = arith.constant 0 : index
    %50 = vector.load %arg5[%c0_14, %c0_15] : memref<1x32xf32, #tpu.memory_space<vmem>>, vector<1x32xf32>
    %51 = vector.shape_cast %50 : vector<1x32xf32> to vector<32xf32>
    %52 = vector.shape_cast %51 : vector<32xf32> to vector<1x32xf32>
    %53 = vector.broadcast %52 : vector<1x32xf32> to vector<8x32xf32>
    %54 = arith.addf %49, %53 : vector<8x32xf32>
    %55 = arith.addf %1, %54 : vector<8x32xf32>
    %cst_16 = arith.constant dense<0.000000e+00> : vector<8xf32>
    %56 = vector.multi_reduction <add>, %55, %cst_16 [1] : vector<8x32xf32> to vector<8xf32>
    %57 = vector.shape_cast %56 : vector<8xf32> to vector<8x1xf32>
    %cst_17 = arith.constant 3.200000e+01 : f32
    %58 = vector.broadcast %cst_17 : f32 to vector<8x1xf32>
    %59 = arith.divf %57, %58 : vector<8x1xf32>
    %60 = vector.broadcast %59 : vector<8x1xf32> to vector<8x32xf32>
    %61 = arith.subf %55, %60 : vector<8x32xf32>
    %62 = arith.mulf %61, %61 : vector<8x32xf32>
    %cst_18 = arith.constant dense<0.000000e+00> : vector<8xf32>
    %63 = vector.multi_reduction <add>, %62, %cst_18 [1] : vector<8x32xf32> to vector<8xf32>
    %64 = vector.shape_cast %63 : vector<8xf32> to vector<8x1xf32>
    %cst_19 = arith.constant 3.200000e+01 : f32
    %65 = vector.broadcast %cst_19 : f32 to vector<8x1xf32>
    %66 = arith.divf %64, %65 : vector<8x1xf32>
    %67 = vector.broadcast %59 : vector<8x1xf32> to vector<8x32xf32>
    %68 = arith.subf %55, %67 : vector<8x32xf32>
    %cst_20 = arith.constant 9.99999974E-6 : f32
    %69 = vector.broadcast %cst_20 : f32 to vector<8x1xf32>
    %70 = arith.addf %66, %69 : vector<8x1xf32>
    %71 = math.rsqrt %70 : vector<8x1xf32>
    %72 = vector.broadcast %71 : vector<8x1xf32> to vector<8x32xf32>
    %73 = arith.mulf %68, %72 : vector<8x32xf32>
    %c0_21 = arith.constant 0 : index
    %c0_22 = arith.constant 0 : index
    %74 = vector.load %arg6[%c0_21, %c0_22] : memref<1x32xf32, #tpu.memory_space<vmem>>, vector<1x32xf32>
    %75 = vector.shape_cast %74 : vector<1x32xf32> to vector<32xf32>
    %76 = vector.shape_cast %75 : vector<32xf32> to vector<1x32xf32>
    %77 = vector.broadcast %76 : vector<1x32xf32> to vector<8x32xf32>
    %78 = arith.mulf %73, %77 : vector<8x32xf32>
    %c0_23 = arith.constant 0 : index
    %c0_24 = arith.constant 0 : index
    %79 = vector.load %arg7[%c0_23, %c0_24] : memref<1x32xf32, #tpu.memory_space<vmem>>, vector<1x32xf32>
    %80 = vector.shape_cast %79 : vector<1x32xf32> to vector<32xf32>
    %81 = vector.shape_cast %80 : vector<32xf32> to vector<1x32xf32>
    %82 = vector.broadcast %81 : vector<1x32xf32> to vector<8x32xf32>
    %83 = arith.addf %78, %82 : vector<8x32xf32>
    %84 = vector.shape_cast %83 : vector<8x32xf32> to vector<1x8x32xf32>
    %c0_25 = arith.constant 0 : index
    %c0_26 = arith.constant 0 : index
    %c0_27 = arith.constant 0 : index
    %85 = vector.load %arg8[%c0_25, %c0_26, %c0_27] : memref<1x8x32xf32, #tpu.memory_space<vmem>>, vector<1x8x32xf32>
    tpu.vector_store %arg8[%c0_25, %c0_26, %c0_27], %84 {strides = array<i32>} : memref<1x8x32xf32, #tpu.memory_space<vmem>>, vector<1x8x32xf32>,
    return
  }
  func.func @transform_0(%arg0: i32) -> (i32, i32, i32) {
    %c0_i32 = arith.constant 0 : i32
    %c0_i32_0 = arith.constant 0 : i32
    %c0_i32_1 = arith.constant 0 : i32
    return %arg0, %c0_i32, %c0_i32_0 : i32, i32, i32
  }
  func.func @transform_1(%arg0: i32) -> (i32, i32) {
    %c0_i32 = arith.constant 0 : i32
    %c0_i32_0 = arith.constant 0 : i32
    %c0_i32_1 = arith.constant 0 : i32
    return %c0_i32, %c0_i32_0 : i32, i32
  }
  func.func @transform_2(%arg0: i32) -> (i32, i32) {
    %c0_i32 = arith.constant 0 : i32
    %c0_i32_0 = arith.constant 0 : i32
    %c0_i32_1 = arith.constant 0 : i32
    return %c0_i32, %c0_i32_0 : i32, i32
  }
  func.func @transform_3(%arg0: i32) -> (i32, i32) {
    %c0_i32 = arith.constant 0 : i32
    %c0_i32_0 = arith.constant 0 : i32
    %c0_i32_1 = arith.constant 0 : i32
    return %c0_i32, %c0_i32_0 : i32, i32
  }
  func.func @transform_4(%arg0: i32) -> (i32, i32) {
    %c0_i32 = arith.constant 0 : i32
    %c0_i32_0 = arith.constant 0 : i32
    %c0_i32_1 = arith.constant 0 : i32
    return %c0_i32, %c0_i32_0 : i32, i32
  }
  func.func @transform_5(%arg0: i32) -> (i32, i32) {
    %c0_i32 = arith.constant 0 : i32
    %c0_i32_0 = arith.constant 0 : i32
    %c0_i32_1 = arith.constant 0 : i32
    return %c0_i32, %c0_i32_0 : i32, i32
  }
  func.func @transform_6(%arg0: i32) -> (i32, i32) {
    %c0_i32 = arith.constant 0 : i32
    %c0_i32_0 = arith.constant 0 : i32
    %c0_i32_1 = arith.constant 0 : i32
    return %c0_i32, %c0_i32_0 : i32, i32
  }
  func.func @transform_7(%arg0: i32) -> (i32, i32, i32) {
    %c0_i32 = arith.constant 0 : i32
    %c0_i32_0 = arith.constant 0 : i32
    %c0_i32_1 = arith.constant 0 : i32
    return %arg0, %c0_i32, %c0_i32_0 : i32, i32, i32
  }
}

</mosaic_0001>

<llo_original>
// kernel: tpu_custom_call.1
$region0: #{tpu_custom_call.1}
  #allocation0 [shape = 'u32[]', space=smem, size = 0x4, offset = 0x4, fixed_abs, tag = 'smem constant byte address 0x4 - core index']
  #allocation1 [shape = 'u32[144,128]{1,0:T(1,128)}', space=vmem, size = 0x12000, scoped, tag = 'internal scratch']
  %s0 = inlined_call_operand.hbm [shape: f32[2,8,32], index: 0, kind: input, shape index: {}]
  %s1 = inlined_call_operand.hbm [shape: f32[32,96], index: 1, kind: input, shape index: {}]
  %s2 = inlined_call_operand.vmem [shape: f32[1,96], index: 2, kind: input, shape index: {}]
  %s3 = inlined_call_operand.hbm [shape: f32[32,32], index: 3, kind: input, shape index: {}]
  %s4 = inlined_call_operand.vmem [shape: f32[1,32], index: 4, kind: input, shape index: {}]
  %s5 = inlined_call_operand.vmem [shape: f32[1,32], index: 5, kind: input, shape index: {}]
  %s6 = inlined_call_operand.vmem [shape: f32[1,32], index: 6, kind: input, shape index: {}]
  %s7 = inlined_call_operand.hbm [shape: f32[2,8,32], index: 7, kind: output, shape index: {}]
  %s8 = sld [smem:[#allocation0]]
  $region73: #{tpu_custom_call.1} parent=0
    _
  %s10 = ssub.s32 1, %s8
  %s11 = scalar_select 0, %s10, %s8
  $region1: #{tpu_custom_call.1} parent=0
    #allocation2 [shape = 'u8[8192]{0}', space=vmem, size = 0x2000, scoped, tag = 'input window, operand 0']
    #allocation3 [shape = 's32[2]{0}', space=sflag, size = 0x8, scoped, tag = 'scoped memory for tpu_custom_call.1']
    #allocation4 [shape = 's32[2]{0}', space=sflag, size = 0x8, scoped, tag = 'scoped memory for tpu_custom_call.1']
    #allocation5 [shape = 'u8[16384]{0}', space=vmem, size = 0x4000, scoped, tag = 'input window, operand 1, single buffered']
    #allocation6 [shape = 's32[1]{0}', space=sflag, size = 0x4, scoped, tag = 'scoped memory for tpu_custom_call.1']
    #allocation7 [shape = 'u8[16384]{0}', space=vmem, size = 0x4000, scoped, tag = 'input window, operand 3, single buffered']
    #allocation8 [shape = 'u8[8192]{0}', space=vmem, size = 0x2000, scoped, tag = 'output window, operand 0']
    %12 = vsyncpa [#allocation3], 0
    %s13 = scalar_lea.sflag [#allocation3], 1
    %14 = vsyncpa %s13, 0
    %15 = vsyncpa [#allocation6], 0
    %16 = vsyncpa [#allocation4], 0
    %s17 = scalar_lea.sflag [#allocation4], 1
    %18 = vsyncpa %s17, 0
    loop: start=0, step=1, limit=4
    $region2: #{tpu_custom_call.1} parent=1 // loop_pre_header
      _
    $region3: #{tpu_custom_call.1} parent=1 // loop_header
      %s20 = sphi 0, %s24
      %p21 = scmp.ge.s32.totalorder %s20, 4
      %s30 = sphi 0, %s32
      %s33 = sphi 0, %s30
      %s34 = sphi 0, %s33
      %s50 = sphi 0, %s34
      %s54 = sphi 0, %s54
      %s56 = sphi 0, %s54
      %s57 = sphi 0, %s56
      %s71 = sphi 0, %s57
      %s75 = sphi 0, %s75
      %s77 = sphi 0, %s75
      %s78 = sphi 0, %s77
      %s92 = sphi 0, %s78
      %s96 = sphi 0, %s96
      %s98 = sphi 0, %s96
      %s99 = sphi 0, %s98
      %s113 = sphi 0, %s99
      %s117 = sphi 0, %s117
      %s119 = sphi 0, %s117
      %s120 = sphi 0, %s119
      %s134 = sphi 0, %s120
      %s138 = sphi 0, %s138
      %s140 = sphi 0, %s138
      %s141 = sphi 0, %s140
      %s155 = sphi 0, %s141
      %s159 = sphi 0, %s159
      %s161 = sphi 0, %s159
      %s162 = sphi 0, %s161
      %s176 = sphi 0, %s162
      %s182 = sphi 0, %s184
      %s185 = sphi 0, %s182
      %s186 = sphi 0, %s185
      %s202 = sphi 0, %s186
    $region4: #{tpu_custom_call.1} parent=1 // loop_header_branch
      %23 = sbr.rel (%p21) target = $region8
    $region5: #{tpu_custom_call.1} parent=1 // loop_body
      %s25 = ssub.s32 %s20, 1
      %s26 = ssub.s32 %s20, 2
      %s27 = sadd.s32 %s20, 1
      %s28 = ssub.s32 %s20, %s27
      %p29 = scmp.eq.s32.totalorder %s28, 0
      %s31 = sadd.s32 %s30, 1
      %s32 = scalar_select %p29, %s30, %s31
      %p35 = pneg %p29
      %p36 = scmp.eq.s32.totalorder %s20, 1
      %p37 = por %p35, %p36
      %p38 = scmp.ne.s32.totalorder %s30, %s33
      %p39 = scmp.eq.s32.totalorder %s20, 0
      %p40 = por %p38, %p39
      %p41 = scmp.ne.s32.totalorder %s30, %s33
      %p42 = scmp.eq.s32.totalorder %s25, 1
      %p43 = por %p41, %p42
      %p44 = scmp.ne.s32.totalorder %s33, %s34
      %p45 = scmp.eq.s32.totalorder %s25, 0
      %p46 = por %p44, %p45
      %p47 = scmp.ne.s32.totalorder %s33, %s34
      %p48 = scmp.eq.s32.totalorder %s26, 1
      %p49 = por %p47, %p48
      %p51 = scmp.ne.s32.totalorder %s34, %s50
      %p52 = scmp.eq.s32.totalorder %s26, 0
      %p53 = por %p51, %p52
      %s55 = sadd.s32 %s54, 1
      %p58 = scmp.eq.s32.totalorder %s20, 1
      %p59 = scmp.ne.s32.totalorder %s54, %s56
      %p60 = scmp.eq.s32.totalorder %s20, 0
      %p61 = por %p59, %p60
      %p62 = scmp.ne.s32.totalorder %s54, %s56
      %p63 = scmp.eq.s32.totalorder %s25, 1
      %p64 = por %p62, %p63
      %p65 = scmp.ne.s32.totalorder %s56, %s57
      %p66 = scmp.eq.s32.totalorder %s25, 0
      %p67 = por %p65, %p66
      %p68 = scmp.ne.s32.totalorder %s56, %s57
      %p69 = scmp.eq.s32.totalorder %s26, 1
      %p70 = por %p68, %p69
      %p72 = scmp.ne.s32.totalorder %s57, %s71
      %p73 = scmp.eq.s32.totalorder %s26, 0
      %p74 = por %p72, %p73
      %s76 = sadd.s32 %s75, 1
      %p79 = scmp.eq.s32.totalorder %s20, 1
      %p80 = scmp.ne.s32.totalorder %s75, %s77
      %p81 = scmp.eq.s32.totalorder %s20, 0
      %p82 = por %p80, %p81
      %p83 = scmp.ne.s32.totalorder %s75, %s77
      %p84 = scmp.eq.s32.totalorder %s25, 1
      %p85 = por %p83, %p84
      %p86 = scmp.ne.s32.totalorder %s77, %s78
      %p87 = scmp.eq.s32.totalorder %s25, 0
      %p88 = por %p86, %p87
      %p89 = scmp.ne.s32.totalorder %s77, %s78
      %p90 = scmp.eq.s32.totalorder %s26, 1
      %p91 = por %p89, %p90
      %p93 = scmp.ne.s32.totalorder %s78, %s92
      %p94 = scmp.eq.s32.totalorder %s26, 0
      %p95 = por %p93, %p94
      %s97 = sadd.s32 %s96, 1
      %p100 = scmp.eq.s32.totalorder %s20, 1
      %p101 = scmp.ne.s32.totalorder %s96, %s98
      %p102 = scmp.eq.s32.totalorder %s20, 0
      %p103 = por %p101, %p102
      %p104 = scmp.ne.s32.totalorder %s96, %s98
      %p105 = scmp.eq.s32.totalorder %s25, 1
      %p106 = por %p104, %p105
      %p107 = scmp.ne.s32.totalorder %s98, %s99
      %p108 = scmp.eq.s32.totalorder %s25, 0
      %p109 = por %p107, %p108
      %p110 = scmp.ne.s32.totalorder %s98, %s99
      %p111 = scmp.eq.s32.totalorder %s26, 1
      %p112 = por %p110, %p111
      %p114 = scmp.ne.s32.totalorder %s99, %s113
      %p115 = scmp.eq.s32.totalorder %s26, 0
      %p116 = por %p114, %p115
      %s118 = sadd.s32 %s117, 1
      %p121 = scmp.eq.s32.totalorder %s20, 1
      %p122 = scmp.ne.s32.totalorder %s117, %s119
      %p123 = scmp.eq.s32.totalorder %s20, 0
      %p124 = por %p122, %p123
      %p125 = scmp.ne.s32.totalorder %s117, %s119
      %p126 = scmp.eq.s32.totalorder %s25, 1
      %p127 = por %p125, %p126
      %p128 = scmp.ne.s32.totalorder %s119, %s120
      %p129 = scmp.eq.s32.totalorder %s25, 0
      %p130 = por %p128, %p129
      %p131 = scmp.ne.s32.totalorder %s119, %s120
      %p132 = scmp.eq.s32.totalorder %s26, 1
      %p133 = por %p131, %p132
      %p135 = scmp.ne.s32.totalorder %s120, %s134
      %p136 = scmp.eq.s32.totalorder %s26, 0
      %p137 = por %p135, %p136
      %s139 = sadd.s32 %s138, 1
      %p142 = scmp.eq.s32.totalorder %s20, 1
      %p143 = scmp.ne.s32.totalorder %s138, %s140
      %p144 = scmp.eq.s32.totalorder %s20, 0
      %p145 = por %p143, %p144
      %p146 = scmp.ne.s32.totalorder %s138, %s140
      %p147 = scmp.eq.s32.totalorder %s25, 1
      %p148 = por %p146, %p147
      %p149 = scmp.ne.s32.totalorder %s140, %s141
      %p150 = scmp.eq.s32.totalorder %s25, 0
      %p151 = por %p149, %p150
      %p152 = scmp.ne.s32.totalorder %s140, %s141
      %p153 = scmp.eq.s32.totalorder %s26, 1
      %p154 = por %p152, %p153
      %p156 = scmp.ne.s32.totalorder %s141, %s155
      %p157 = scmp.eq.s32.totalorder %s26, 0
      %p158 = por %p156, %p157
      %s160 = sadd.s32 %s159, 1
      %p163 = scmp.eq.s32.totalorder %s20, 1
      %p164 = scmp.ne.s32.totalorder %s159, %s161
      %p165 = scmp.eq.s32.totalorder %s20, 0
      %p166 = por %p164, %p165
      %p167 = scmp.ne.s32.totalorder %s159, %s161
      %p168 = scmp.eq.s32.totalorder %s25, 1
      %p169 = por %p167, %p168
      %p170 = scmp.ne.s32.totalorder %s161, %s162
      %p171 = scmp.eq.s32.totalorder %s25, 0
      %p172 = por %p170, %p171
      %p173 = scmp.ne.s32.totalorder %s161, %s162
      %p174 = scmp.eq.s32.totalorder %s26, 1
      %p175 = por %p173, %p174
      %p177 = scmp.ne.s32.totalorder %s162, %s176
      %p178 = scmp.eq.s32.totalorder %s26, 0
      %p179 = por %p177, %p178
      %s180 = ssub.s32 %s20, %s27
      %p181 = scmp.eq.s32.totalorder %s180, 0
      %s183 = sadd.s32 %s182, 1
      %s184 = scalar_select %p181, %s182, %s183
      %p187 = pneg %p181
      %p188 = scmp.eq.s32.totalorder %s20, 1
      %p189 = por %p187, %p188
      %p190 = scmp.ne.s32.totalorder %s182, %s185
      %p191 = scmp.eq.s32.totalorder %s20, 0
      %p192 = por %p190, %p191
      %p193 = scmp.ne.s32.totalorder %s182, %s185
      %p194 = scmp.eq.s32.totalorder %s25, 1
      %p195 = por %p193, %p194
      %p196 = scmp.ne.s32.totalorder %s185, %s186
      %p197 = scmp.eq.s32.totalorder %s25, 0
      %p198 = por %p196, %p197
      %p199 = scmp.ne.s32.totalorder %s185, %s186
      %p200 = scmp.eq.s32.totalorder %s26, 1
      %p201 = por %p199, %p200
      %p203 = scmp.ne.s32.totalorder %s186, %s202
      %p204 = scmp.eq.s32.totalorder %s26, 0
      %p205 = por %p203, %p204
      %p206 = scmp.le.s32.totalorder 1, %s20
      %p207 = scmp.lt.s32.totalorder %s20, 3
      %p208 = pnand %p206, %p207
      %p209 = pneg %p208
      // Predicated region
      $region9: #{tpu_custom_call.1} parent=5 // pred_check
        _
      $region10: #{tpu_custom_call.1} parent=5 // pred_check_branch
        %211 = sbr.rel (%p208) target = $region12
      $region11: #{tpu_custom_call.1} parent=5 // pred_region
        %s212 = ssub.s32 %s20, 1
        // Predicated region
        $region13: #{tpu_custom_call.1} parent=11 // pred_check
          %p213 = pneg %p67
        $region14: #{tpu_custom_call.1} parent=11 // pred_check_branch
          %215 = sbr.rel (%p213) target = $region16
        $region15: #{tpu_custom_call.1} parent=11 // pred_region
          %s217 = ssub.s32 512, 512
          %218 = vsyncadd [#allocation6], %s217
          %s219 = sshll.u32 [#allocation5], 4
          %s220 = int_to_ptr.vmem [resolvable:$true] %s219
          %225 = dma.hbm_to_vmem [thread:$0]  %s1, 512, %s220, [#allocation6], 128, 128, 8
        $region16: #{tpu_custom_call.1} parent=11 // pred_fallthru
          _
        // Predicated region
        $region17: #{tpu_custom_call.1} parent=11 // pred_check
          %p226 = pneg %p88
        $region18: #{tpu_custom_call.1} parent=11 // pred_check_branch
          %228 = sbr.rel (%p226) target = $region20
        $region19: #{tpu_custom_call.1} parent=11 // pred_region
          _
        $region20: #{tpu_custom_call.1} parent=11 // pred_fallthru
          _
        // Predicated region
        $region21: #{tpu_custom_call.1} parent=11 // pred_check
          %p229 = pneg %p109
        $region22: #{tpu_custom_call.1} parent=11 // pred_check_branch
          %231 = sbr.rel (%p229) target = $region24
        $region23: #{tpu_custom_call.1} parent=11 // pred_region
          %s233 = ssub.s32 512, 512
          %234 = vsyncadd [#allocation6], %s233
          %s235 = sshll.u32 [#allocation7], 4
          %s236 = int_to_ptr.vmem [resolvable:$true] %s235
          %241 = dma.hbm_to_vmem [thread:$0]  %s3, 512, %s236, [#allocation6], 128, 128, 8
        $region24: #{tpu_custom_call.1} parent=11 // pred_fallthru
          _
        // Predicated region
        $region25: #{tpu_custom_call.1} parent=11 // pred_check
          %p242 = pneg %p130
        $region26: #{tpu_custom_call.1} parent=11 // pred_check_branch
          %244 = sbr.rel (%p242) target = $region28
        $region27: #{tpu_custom_call.1} parent=11 // pred_region
          _
        $region28: #{tpu_custom_call.1} parent=11 // pred_fallthru
          _
        // Predicated region
        $region29: #{tpu_custom_call.1} parent=11 // pred_check
          %p245 = pneg %p151
        $region30: #{tpu_custom_call.1} parent=11 // pred_check_branch
          %247 = sbr.rel (%p245) target = $region32
        $region31: #{tpu_custom_call.1} parent=11 // pred_region
          _
        $region32: #{tpu_custom_call.1} parent=11 // pred_fallthru
          _
        // Predicated region
        $region33: #{tpu_custom_call.1} parent=11 // pred_check
          %p248 = pneg %p172
        $region34: #{tpu_custom_call.1} parent=11 // pred_check_branch
          %250 = sbr.rel (%p248) target = $region36
        $region35: #{tpu_custom_call.1} parent=11 // pred_region
          _
        $region36: #{tpu_custom_call.1} parent=11 // pred_fallthru
          _
      $region12: #{tpu_custom_call.1} parent=5 // pred_fallthru
        _
      %p251 = scmp.lt.s32.totalorder %s20, 2
      // Predicated region
      $region37: #{tpu_custom_call.1} parent=5 // pred_check
        %p252 = pneg %p251
      $region38: #{tpu_custom_call.1} parent=5 // pred_check_branch
        %254 = sbr.rel (%p252) target = $region40
      $region39: #{tpu_custom_call.1} parent=5 // pred_region
        // Predicated region
        $region41: #{tpu_custom_call.1} parent=39 // pred_check
          %p255 = pneg %p40
        $region42: #{tpu_custom_call.1} parent=39 // pred_check_branch
          %257 = sbr.rel (%p255) target = $region44
        $region43: #{tpu_custom_call.1} parent=39 // pred_region
          %s258 = sand.u32 %s30, 1
          %s259 = scalar_lea.sflag [#allocation3], %s258
          %s260 = sand.u32 %s30, 1
          %s261 = smul.addr %s260, 8
          %s262 = scalar_lea.vmem [#allocation2], %s261
          %s264 = ssub.s32 128, 128
          %265 = vsyncadd %s259, %s264
          %s266 = smul.addr %s20, 128
          %s267 = scalar_lea.hbm %s0, %s266
          %s269 = sshll.u32 %s262, 4
          %s270 = int_to_ptr.vmem [resolvable:$true] %s269
          %272 = dma.hbm_to_vmem [thread:$0]  %s267, 128, %s270, %s259
        $region44: #{tpu_custom_call.1} parent=39 // pred_fallthru
          _
      $region40: #{tpu_custom_call.1} parent=5 // pred_fallthru
        _
      %p273 = scmp.le.s32.totalorder 1, %s20
      %p274 = scmp.lt.s32.totalorder %s20, 3
      %p275 = pnand %p273, %p274
      %p276 = pneg %p275
      // Predicated region
      $region45: #{tpu_custom_call.1} parent=5 // pred_check
        _
      $region46: #{tpu_custom_call.1} parent=5 // pred_check_branch
        %278 = sbr.rel (%p275) target = $region48
      $region47: #{tpu_custom_call.1} parent=5 // pred_region
        %s279 = ssub.s32 %s20, 1
        %s280 = sand.u32 %s33, 1
        %s281 = scalar_lea.sflag [#allocation3], %s280
        %s282 = sand.u32 %s33, 1
        %s283 = smul.addr %s282, 8
        %s284 = scalar_lea.vmem [#allocation2], %s283
        // Predicated region
        $region49: #{tpu_custom_call.1} parent=47 // pred_check
          %p285 = pneg %p46
        $region50: #{tpu_custom_call.1} parent=47 // pred_check_branch
          %287 = sbr.rel (%p285) target = $region52
        $region51: #{tpu_custom_call.1} parent=47 // pred_region
          %288 = dma.done %s281, 128
        $region52: #{tpu_custom_call.1} parent=47 // pred_fallthru
          _
        // Predicated region
        $region53: #{tpu_custom_call.1} parent=47 // pred_check
          %p289 = pneg %p67
        $region54: #{tpu_custom_call.1} parent=47 // pred_check_branch
          %291 = sbr.rel (%p289) target = $region56
        $region55: #{tpu_custom_call.1} parent=47 // pred_region
          %292 = dma.done [#allocation6], 512
        $region56: #{tpu_custom_call.1} parent=47 // pred_fallthru
          _
        // Predicated region
        $region57: #{tpu_custom_call.1} parent=47 // pred_check
          %p293 = pneg %p109
        $region58: #{tpu_custom_call.1} parent=47 // pred_check_branch
          %295 = sbr.rel (%p293) target = $region60
        $region59: #{tpu_custom_call.1} parent=47 // pred_region
          %296 = dma.done [#allocation6], 512
        $region60: #{tpu_custom_call.1} parent=47 // pred_fallthru
          _
        %s297 = sand.u32 %s33, 1
        %s298 = scalar_lea.sflag [#allocation3], %s297
        %s299 = sand.u32 %s33, 1
        %s300 = smul.addr %s299, 8
        %s301 = scalar_lea.vmem [#allocation2], %s300
        %p302 = pneg %p46
        %p303 = pneg %p43
        %p304 = pneg %p67
        %p305 = pneg %p64
        %p306 = pneg %p88
        %p307 = pneg %p85
        %p308 = pneg %p109
        %p309 = pneg %p106
        %p310 = pneg %p130
        %p311 = pneg %p127
        %p312 = pneg %p151
        %p313 = pneg %p148
        %p314 = pneg %p172
        %p315 = pneg %p169
        %p316 = pneg %p198
        %p317 = pneg %p195
        %s318 = sand.u32 %s185, 1
        %s319 = scalar_lea.sflag [#allocation4], %s318
        %s320 = sand.u32 %s185, 1
        %s321 = smul.addr %s320, 8
        %s322 = scalar_lea.vmem [#allocation8], %s321
        %v323 = vld [vmem:[%s284] sm:$0xff]
        %v324 = vld [vmem:[#allocation5] sm:$0xff]
        %v325 = vld [vmem:[#allocation5 + $0x8] sm:$0xff]
        %v326 = vld [vmem:[#allocation5 + $0x10] sm:$0xff]
        %v327 = vld [vmem:[#allocation5 + $0x18] sm:$0xff]
        %v328 = vld [vmem:[%s2] sm:$0x1]
        %v330 = vlaneseq
        %v331 = vshrl.u32 %v330, 7
        %v332 = vsub.s32 0, %v331
        %v333 = vrot.slane %v328, %v332
        %vm335 = vcmask 261120
        %v337 = vsel %vm335, %v323, 0
        %339 = vmatprep.subr.mxu0 0.0
        %340 = vmatpush1.msra.mxu0 0.0
        %341 = vmatprep.subr.mxu0 0.0
        %342 = vmatpush1.msra.mxu0 0.0
        %343 = vmatprep.subr.mxu0 0.0
        %344 = vmatpush1.msra.mxu0 0.0
        %345 = vmatprep.subr.mxu0 0.0
        %346 = vmatpush1.msra.mxu0 0.0
        %347 = vmatprep.subr.mxu0 0.0
        %348 = vmatpush1.msra.mxu0 0.0
        %349 = vmatprep.subr.mxu0 0.0
        %350 = vmatpush1.msra.mxu0 0.0
        %351 = vmatprep.subr.mxu0 0.0
        %352 = vmatpush1.msra.mxu0 0.0
        %353 = vmatprep.subr.mxu0 0.0
        %354 = vmatpush1.msra.mxu0 0.0
        %355 = vmatprep.subr.mxu0 0.0
        %356 = vmatpush1.msra.mxu0 0.0
        %357 = vmatprep.subr.mxu0 0.0
        %358 = vmatpush1.msra.mxu0 0.0
        %359 = vmatprep.subr.mxu0 0.0
        %360 = vmatpush1.msra.mxu0 0.0
        %361 = vmatprep.subr.mxu0 0.0
        %362 = vmatpush1.msra.mxu0 0.0
        %363 = vmatprep.subr.mxu0 0.0
        %364 = vmatpush1.msra.mxu0 %v327
        %365 = vmatprep.subr.mxu0 0.0
        %366 = vmatpush1.msra.mxu0 %v326
        %367 = vmatprep.subr.mxu0 0.0
        %368 = vmatpush1.msra.mxu0 %v325
        %369 = vmatprep.subr.mxu0 0.0
        %370 = vmatpush1.msra.mxu0 %v324
        %371 = vmatprep.subr.mxu0 0.0
        %372 = vmatpush2.msra.mxu0 0.0
        %373 = vmatprep.subr.mxu0 0.0
        %374 = vmatpush2.msra.mxu0 0.0
        %375 = vmatprep.subr.mxu0 0.0
        %376 = vmatpush2.msra.mxu0 0.0
        %377 = vmatprep.subr.mxu0 0.0
        %378 = vmatpush2.msra.mxu0 0.0
        %379 = vmatprep.subr.mxu0 0.0
        %380 = vmatpush2.msra.mxu0 0.0
        %381 = vmatprep.subr.mxu0 0.0
        %382 = vmatpush2.msra.mxu0 0.0
        %383 = vmatprep.subr.mxu0 0.0
        %384 = vmatpush2.msra.mxu0 0.0
        %385 = vmatprep.subr.mxu0 0.0
        %386 = vmatpush2.msra.mxu0 0.0
        %387 = vmatprep.subr.mxu0 0.0
        %388 = vmatpush2.msra.mxu0 0.0
        %389 = vmatprep.subr.mxu0 0.0
        %390 = vmatpush2.msra.mxu0 0.0
        %391 = vmatprep.subr.mxu0 0.0
        %392 = vmatpush2.msra.mxu0 0.0
        %393 = vmatprep.subr.mxu0 0.0
        %394 = vmatpush2.msra.mxu0 0.0
        %395 = vmatprep.subr.mxu0 0.0
        %396 = vmatpush2.msra.mxu0 0.0
        %397 = vmatprep.subr.mxu0 0.0
        %398 = vmatpush2.msra.mxu0 0.0
        %399 = vmatprep.subr.mxu0 0.0
        %400 = vmatpush2.msra.mxu0 0.0
        %401 = vmatprep.subr.mxu0 0.0
        %402 = vmatpush2.msra.mxu0 0.0
        %403 = vmatprep.mubr.f32.mxu0 0.0
        %404 = vmatmul.mubr.f32.gmra.mxu0 %v337
        %v405 = vpop.f32.mrf.mxu0
        %v406 = vadd.f32 %v333, %v405
        %v407 = vpop.f32.mrf.mxu0
        %408 = vdwg.mxu0
        %410 = vrot.lane.b32.xlu0 %v406, 120
        %v411 = vpop.permute.xlu0 %410
        %412 = vrot.lane.b32.xlu0 %v406, 112
        %v413 = vpop.permute.xlu0 %412
        %414 = vrot.lane.b32.xlu0 %v406, 104
        %v415 = vpop.permute.xlu0 %414
        %416 = vrot.lane.b32.xlu0 %v406, 96
        %v417 = vpop.permute.xlu0 %416
        %vm418 = vcmask 64512
        %v419 = vsel %vm418, %v406, 0
        %v421 = vsel %vm418, %v417, 0
        %423 = vmatprep.subr.mxu0 0.0
        %424 = vmatpush1.xpose.msra.mxu0 0.0
        %425 = vmatprep.subr.mxu0 0.0
        %426 = vmatpush1.xpose.msra.mxu0 0.0
        %427 = vmatprep.subr.mxu0 0.0
        %428 = vmatpush1.xpose.msra.mxu0 0.0
        %429 = vmatprep.subr.mxu0 0.0
        %430 = vmatpush1.xpose.msra.mxu0 0.0
        %431 = vmatprep.subr.mxu0 0.0
        %432 = vmatpush1.xpose.msra.mxu0 0.0
        %433 = vmatprep.subr.mxu0 0.0
        %434 = vmatpush1.xpose.msra.mxu0 0.0
        %435 = vmatprep.subr.mxu0 0.0
        %436 = vmatpush1.xpose.msra.mxu0 0.0
        %437 = vmatprep.subr.mxu0 0.0
        %438 = vmatpush1.xpose.msra.mxu0 0.0
        %439 = vmatprep.subr.mxu0 0.0
        %440 = vmatpush1.xpose.msra.mxu0 0.0
        %441 = vmatprep.subr.mxu0 0.0
        %442 = vmatpush1.xpose.msra.mxu0 0.0
        %443 = vmatprep.subr.mxu0 0.0
        %444 = vmatpush1.xpose.msra.mxu0 0.0
        %445 = vmatprep.subr.mxu0 0.0
        %446 = vmatpush1.xpose.msra.mxu0 0.0
        %447 = vmatprep.subr.mxu0 0.0
        %448 = vmatpush1.xpose.msra.mxu0 0.0
        %449 = vmatprep.subr.mxu0 0.0
        %450 = vmatpush1.xpose.msra.mxu0 0.0
        %451 = vmatprep.subr.mxu0 0.0
        %452 = vmatpush1.xpose.msra.mxu0 0.0
        %453 = vmatprep.subr.mxu0 0.0
        %454 = vmatpush1.xpose.msra.mxu0 %v421
        %455 = vmatprep.subr.mxu0 0.0
        %456 = vmatpush2.xpose.msra.mxu0 0.0
        %457 = vmatprep.subr.mxu0 0.0
        %458 = vmatpush2.xpose.msra.mxu0 0.0
        %459 = vmatprep.subr.mxu0 0.0
        %460 = vmatpush2.xpose.msra.mxu0 0.0
        %461 = vmatprep.subr.mxu0 0.0
        %462 = vmatpush2.xpose.msra.mxu0 0.0
        %463 = vmatprep.subr.mxu0 0.0
        %464 = vmatpush2.xpose.msra.mxu0 0.0
        %465 = vmatprep.subr.mxu0 0.0
        %466 = vmatpush2.xpose.msra.mxu0 0.0
        %467 = vmatprep.subr.mxu0 0.0
        %468 = vmatpush2.xpose.msra.mxu0 0.0
        %469 = vmatprep.subr.mxu0 0.0
        %470 = vmatpush2.xpose.msra.mxu0 0.0
        %471 = vmatprep.subr.mxu0 0.0
        %472 = vmatpush2.xpose.msra.mxu0 0.0
        %473 = vmatprep.subr.mxu0 0.0
        %474 = vmatpush2.xpose.msra.mxu0 0.0
        %475 = vmatprep.subr.mxu0 0.0
        %476 = vmatpush2.xpose.msra.mxu0 0.0
        %477 = vmatprep.subr.mxu0 0.0
        %478 = vmatpush2.xpose.msra.mxu0 0.0
        %479 = vmatprep.subr.mxu0 0.0
        %480 = vmatpush2.xpose.msra.mxu0 0.0
        %481 = vmatprep.subr.mxu0 0.0
        %482 = vmatpush2.xpose.msra.mxu0 0.0
        %483 = vmatprep.subr.mxu0 0.0
        %484 = vmatpush2.xpose.msra.mxu0 0.0
        %485 = vmatprep.subr.mxu0 0.0
        %486 = vmatpush2.xpose.msra.mxu0 0.0
        %487 = vmatprep.mubr.f32.mxu0 0.0
        %488 = vmatmul.mubr.f32.gmra.mxu0 %v419
        %v489 = vpop.f32.mrf.mxu0
        %v490 = vadd.f32 0.0, %v489
        %v491 = vpop.f32.mrf.mxu0
        %492 = vdwg.mxu0
        %493 = vrot.lane.b32.xlu0 %v411, 96
        %v494 = vpop.permute.xlu0 %493
        %v495 = vsel %vm418, %v411, 0
        %v497 = vsel %vm418, %v494, 0
        %499 = vmatprep.subr.mxu0 0.0
        %500 = vmatpush1.xpose.msra.mxu0 0.0
        %501 = vmatprep.subr.mxu0 0.0
        %502 = vmatpush1.xpose.msra.mxu0 0.0
        %503 = vmatprep.subr.mxu0 0.0
        %504 = vmatpush1.xpose.msra.mxu0 0.0
        %505 = vmatprep.subr.mxu0 0.0
        %506 = vmatpush1.xpose.msra.mxu0 0.0
        %507 = vmatprep.subr.mxu0 0.0
        %508 = vmatpush1.xpose.msra.mxu0 0.0
        %509 = vmatprep.subr.mxu0 0.0
        %510 = vmatpush1.xpose.msra.mxu0 0.0
        %511 = vmatprep.subr.mxu0 0.0
        %512 = vmatpush1.xpose.msra.mxu0 0.0
        %513 = vmatprep.subr.mxu0 0.0
        %514 = vmatpush1.xpose.msra.mxu0 0.0
        %515 = vmatprep.subr.mxu0 0.0
        %516 = vmatpush1.xpose.msra.mxu0 0.0
        %517 = vmatprep.subr.mxu0 0.0
        %518 = vmatpush1.xpose.msra.mxu0 0.0
        %519 = vmatprep.subr.mxu0 0.0
        %520 = vmatpush1.xpose.msra.mxu0 0.0
        %521 = vmatprep.subr.mxu0 0.0
        %522 = vmatpush1.xpose.msra.mxu0 0.0
        %523 = vmatprep.subr.mxu0 0.0
        %524 = vmatpush1.xpose.msra.mxu0 0.0
        %525 = vmatprep.subr.mxu0 0.0
        %526 = vmatpush1.xpose.msra.mxu0 0.0
        %527 = vmatprep.subr.mxu0 0.0
        %528 = vmatpush1.xpose.msra.mxu0 0.0
        %529 = vmatprep.subr.mxu0 0.0
        %530 = vmatpush1.xpose.msra.mxu0 %v497
        %531 = vmatprep.subr.mxu0 0.0
        %532 = vmatpush2.xpose.msra.mxu0 0.0
        %533 = vmatprep.subr.mxu0 0.0
        %534 = vmatpush2.xpose.msra.mxu0 0.0
        %535 = vmatprep.subr.mxu0 0.0
        %536 = vmatpush2.xpose.msra.mxu0 0.0
        %537 = vmatprep.subr.mxu0 0.0
        %538 = vmatpush2.xpose.msra.mxu0 0.0
        %539 = vmatprep.subr.mxu0 0.0
        %540 = vmatpush2.xpose.msra.mxu0 0.0
        %541 = vmatprep.subr.mxu0 0.0
        %542 = vmatpush2.xpose.msra.mxu0 0.0
        %543 = vmatprep.subr.mxu0 0.0
        %544 = vmatpush2.xpose.msra.mxu0 0.0
        %545 = vmatprep.subr.mxu0 0.0
        %546 = vmatpush2.xpose.msra.mxu0 0.0
        %547 = vmatprep.subr.mxu0 0.0
        %548 = vmatpush2.xpose.msra.mxu0 0.0
        %549 = vmatprep.subr.mxu0 0.0
        %550 = vmatpush2.xpose.msra.mxu0 0.0
        %551 = vmatprep.subr.mxu0 0.0
        %552 = vmatpush2.xpose.msra.mxu0 0.0
        %553 = vmatprep.subr.mxu0 0.0
        %554 = vmatpush2.xpose.msra.mxu0 0.0
        %555 = vmatprep.subr.mxu0 0.0
        %556 = vmatpush2.xpose.msra.mxu0 0.0
        %557 = vmatprep.subr.mxu0 0.0
        %558 = vmatpush2.xpose.msra.mxu0 0.0
        %559 = vmatprep.subr.mxu0 0.0
        %560 = vmatpush2.xpose.msra.mxu0 0.0
        %561 = vmatprep.subr.mxu0 0.0
        %562 = vmatpush2.xpose.msra.mxu0 0.0
        %563 = vmatprep.mubr.f32.mxu0 0.0
        %564 = vmatmul.mubr.f32.gmra.mxu0 %v495
        %v565 = vpop.f32.mrf.mxu0
        %v566 = vadd.f32 0.0, %v565
        %v567 = vpop.f32.mrf.mxu0
        %568 = vdwg.mxu0
        %569 = vrot.lane.b32.xlu0 %v413, 96
        %v570 = vpop.permute.xlu0 %569
        %v571 = vsel %vm418, %v413, 0
        %v573 = vsel %vm418, %v570, 0
        %575 = vmatprep.subr.mxu0 0.0
        %576 = vmatpush1.xpose.msra.mxu0 0.0
        %577 = vmatprep.subr.mxu0 0.0
        %578 = vmatpush1.xpose.msra.mxu0 0.0
        %579 = vmatprep.subr.mxu0 0.0
        %580 = vmatpush1.xpose.msra.mxu0 0.0
        %581 = vmatprep.subr.mxu0 0.0
        %582 = vmatpush1.xpose.msra.mxu0 0.0
        %583 = vmatprep.subr.mxu0 0.0
        %584 = vmatpush1.xpose.msra.mxu0 0.0
        %585 = vmatprep.subr.mxu0 0.0
        %586 = vmatpush1.xpose.msra.mxu0 0.0
        %587 = vmatprep.subr.mxu0 0.0
        %588 = vmatpush1.xpose.msra.mxu0 0.0
        %589 = vmatprep.subr.mxu0 0.0
        %590 = vmatpush1.xpose.msra.mxu0 0.0
        %591 = vmatprep.subr.mxu0 0.0
        %592 = vmatpush1.xpose.msra.mxu0 0.0
        %593 = vmatprep.subr.mxu0 0.0
        %594 = vmatpush1.xpose.msra.mxu0 0.0
        %595 = vmatprep.subr.mxu0 0.0
        %596 = vmatpush1.xpose.msra.mxu0 0.0
        %597 = vmatprep.subr.mxu0 0.0
        %598 = vmatpush1.xpose.msra.mxu0 0.0
        %599 = vmatprep.subr.mxu0 0.0
        %600 = vmatpush1.xpose.msra.mxu0 0.0
        %601 = vmatprep.subr.mxu0 0.0
        %602 = vmatpush1.xpose.msra.mxu0 0.0
        %603 = vmatprep.subr.mxu0 0.0
        %604 = vmatpush1.xpose.msra.mxu0 0.0
        %605 = vmatprep.subr.mxu0 0.0
        %606 = vmatpush1.xpose.msra.mxu0 %v573
        %607 = vmatprep.subr.mxu0 0.0
        %608 = vmatpush2.xpose.msra.mxu0 0.0
        %609 = vmatprep.subr.mxu0 0.0
        %610 = vmatpush2.xpose.msra.mxu0 0.0
        %611 = vmatprep.subr.mxu0 0.0
        %612 = vmatpush2.xpose.msra.mxu0 0.0
        %613 = vmatprep.subr.mxu0 0.0
        %614 = vmatpush2.xpose.msra.mxu0 0.0
        %615 = vmatprep.subr.mxu0 0.0
        %616 = vmatpush2.xpose.msra.mxu0 0.0
        %617 = vmatprep.subr.mxu0 0.0
        %618 = vmatpush2.xpose.msra.mxu0 0.0
        %619 = vmatprep.subr.mxu0 0.0
        %620 = vmatpush2.xpose.msra.mxu0 0.0
        %621 = vmatprep.subr.mxu0 0.0
        %622 = vmatpush2.xpose.msra.mxu0 0.0
        %623 = vmatprep.subr.mxu0 0.0
        %624 = vmatpush2.xpose.msra.mxu0 0.0
        %625 = vmatprep.subr.mxu0 0.0
        %626 = vmatpush2.xpose.msra.mxu0 0.0
        %627 = vmatprep.subr.mxu0 0.0
        %628 = vmatpush2.xpose.msra.mxu0 0.0
        %629 = vmatprep.subr.mxu0 0.0
        %630 = vmatpush2.xpose.msra.mxu0 0.0
        %631 = vmatprep.subr.mxu0 0.0
        %632 = vmatpush2.xpose.msra.mxu0 0.0
        %633 = vmatprep.subr.mxu0 0.0
        %634 = vmatpush2.xpose.msra.mxu0 0.0
        %635 = vmatprep.subr.mxu0 0.0
        %636 = vmatpush2.xpose.msra.mxu0 0.0
        %637 = vmatprep.subr.mxu0 0.0
        %638 = vmatpush2.xpose.msra.mxu0 0.0
        %639 = vmatprep.mubr.f32.mxu0 0.0
        %640 = vmatmul.mubr.f32.gmra.mxu0 %v571
        %v641 = vpop.f32.mrf.mxu0
        %v642 = vadd.f32 0.0, %v641
        %v643 = vpop.f32.mrf.mxu0
        %644 = vdwg.mxu0
        %645 = vrot.lane.b32.xlu0 %v415, 96
        %v646 = vpop.permute.xlu0 %645
        %v647 = vsel %vm418, %v415, 0
        %v649 = vsel %vm418, %v646, 0
        %651 = vmatprep.subr.mxu0 0.0
        %652 = vmatpush1.xpose.msra.mxu0 0.0
        %653 = vmatprep.subr.mxu0 0.0
        %654 = vmatpush1.xpose.msra.mxu0 0.0
        %655 = vmatprep.subr.mxu0 0.0
        %656 = vmatpush1.xpose.msra.mxu0 0.0
        %657 = vmatprep.subr.mxu0 0.0
        %658 = vmatpush1.xpose.msra.mxu0 0.0
        %659 = vmatprep.subr.mxu0 0.0
        %660 = vmatpush1.xpose.msra.mxu0 0.0
        %661 = vmatprep.subr.mxu0 0.0
        %662 = vmatpush1.xpose.msra.mxu0 0.0
        %663 = vmatprep.subr.mxu0 0.0
        %664 = vmatpush1.xpose.msra.mxu0 0.0
        %665 = vmatprep.subr.mxu0 0.0
        %666 = vmatpush1.xpose.msra.mxu0 0.0
        %667 = vmatprep.subr.mxu0 0.0
        %668 = vmatpush1.xpose.msra.mxu0 0.0
        %669 = vmatprep.subr.mxu0 0.0
        %670 = vmatpush1.xpose.msra.mxu0 0.0
        %671 = vmatprep.subr.mxu0 0.0
        %672 = vmatpush1.xpose.msra.mxu0 0.0
        %673 = vmatprep.subr.mxu0 0.0
        %674 = vmatpush1.xpose.msra.mxu0 0.0
        %675 = vmatprep.subr.mxu0 0.0
        %676 = vmatpush1.xpose.msra.mxu0 0.0
        %677 = vmatprep.subr.mxu0 0.0
        %678 = vmatpush1.xpose.msra.mxu0 0.0
        %679 = vmatprep.subr.mxu0 0.0
        %680 = vmatpush1.xpose.msra.mxu0 0.0
        %681 = vmatprep.subr.mxu0 0.0
        %682 = vmatpush1.xpose.msra.mxu0 %v649
        %683 = vmatprep.subr.mxu0 0.0
        %684 = vmatpush2.xpose.msra.mxu0 0.0
        %685 = vmatprep.subr.mxu0 0.0
        %686 = vmatpush2.xpose.msra.mxu0 0.0
        %687 = vmatprep.subr.mxu0 0.0
        %688 = vmatpush2.xpose.msra.mxu0 0.0
        %689 = vmatprep.subr.mxu0 0.0
        %690 = vmatpush2.xpose.msra.mxu0 0.0
        %691 = vmatprep.subr.mxu0 0.0
        %692 = vmatpush2.xpose.msra.mxu0 0.0
        %693 = vmatprep.subr.mxu0 0.0
        %694 = vmatpush2.xpose.msra.mxu0 0.0
        %695 = vmatprep.subr.mxu0 0.0
        %696 = vmatpush2.xpose.msra.mxu0 0.0
        %697 = vmatprep.subr.mxu0 0.0
        %698 = vmatpush2.xpose.msra.mxu0 0.0
        %699 = vmatprep.subr.mxu0 0.0
        %700 = vmatpush2.xpose.msra.mxu0 0.0
        %701 = vmatprep.subr.mxu0 0.0
        %702 = vmatpush2.xpose.msra.mxu0 0.0
        %703 = vmatprep.subr.mxu0 0.0
        %704 = vmatpush2.xpose.msra.mxu0 0.0
        %705 = vmatprep.subr.mxu0 0.0
        %706 = vmatpush2.xpose.msra.mxu0 0.0
        %707 = vmatprep.subr.mxu0 0.0
        %708 = vmatpush2.xpose.msra.mxu0 0.0
        %709 = vmatprep.subr.mxu0 0.0
        %710 = vmatpush2.xpose.msra.mxu0 0.0
        %711 = vmatprep.subr.mxu0 0.0
        %712 = vmatpush2.xpose.msra.mxu0 0.0
        %713 = vmatprep.subr.mxu0 0.0
        %714 = vmatpush2.xpose.msra.mxu0 0.0
        %715 = vmatprep.mubr.f32.mxu0 0.0
        %716 = vmatmul.mubr.f32.gmra.mxu0 %v647
        %v717 = vpop.f32.mrf.mxu0
        %v718 = vadd.f32 0.0, %v717
        %v719 = vpop.f32.mrf.mxu0
        %720 = vdwg.mxu0
        %v721 = vmul.f32 %v490, 0.35355338
        %v722 = vmul.f32 %v566, 0.35355338
        %v723 = vmul.f32 %v642, 0.35355338
        %v724 = vmul.f32 %v718, 0.35355338
        %v725 = vsel %vm418, %v721, -inf
        %726 = vmax.xlane.f32.xlu0 %v725
        %v727 = vpop.xlane.xlu0 %726
        %v728 = vsel %vm418, %v722, -inf
        %729 = vmax.xlane.f32.xlu0 %v728
        %v730 = vpop.xlane.xlu0 %729
        %v731 = vsel %vm418, %v723, -inf
        %732 = vmax.xlane.f32.xlu0 %v731
        %v733 = vpop.xlane.xlu0 %732
        %v734 = vsel %vm418, %v724, -inf
        %735 = vmax.xlane.f32.xlu0 %v734
        %v736 = vpop.xlane.xlu0 %735
        %v737 = vsub.f32 %v721, %v727
        %v738 = vsub.f32 %v722, %v730
        %v739 = vsub.f32 %v723, %v733
        %v740 = vsub.f32 %v724, %v736
        %v741 = vmul.f32 %v737, 1.442695
        %v742 = vpow.pop %v741
        %v743 = vmul.f32 %v738, 1.442695
        %v744 = vpow.pop %v743
        %v745 = vmul.f32 %v739, 1.442695
        %v746 = vpow.pop %v745
        %v747 = vmul.f32 %v740, 1.442695
        %v748 = vpow.pop %v747
        %v749 = vsel %vm418, %v742, 0.0
        %750 = vadd.xlane.f32.xlu0 %v749
        %v751 = vpop.xlane.xlu0 %750
        %v752 = vsel %vm418, %v744, 0.0
        %753 = vadd.xlane.f32.xlu0 %v752
        %v754 = vpop.xlane.xlu0 %753
        %v755 = vsel %vm418, %v746, 0.0
        %756 = vadd.xlane.f32.xlu0 %v755
        %v757 = vpop.xlane.xlu0 %756
        %v758 = vsel %vm418, %v748, 0.0
        %759 = vadd.xlane.f32.xlu0 %v758
        %v760 = vpop.xlane.xlu0 %759
        %v761 = vrcp.pop %v751
        %v762 = vrcp.pop %v754
        %v763 = vrcp.pop %v757
        %v764 = vrcp.pop %v760
        %v765 = vmul.f32 %v742, %v761
        %v766 = vmul.f32 %v744, %v762
        %v767 = vmul.f32 %v746, %v763
        %v768 = vmul.f32 %v748, %v764
        %769 = vrot.lane.b32.xlu0 %v406, 64
        %v770 = vpop.permute.xlu0 %769
        %v773 = vsel %vm418, %v765, 0
        %775 = vmatprep.subr.mxu0 0.0
        %776 = vmatpush1.msra.mxu0 0.0
        %777 = vmatprep.subr.mxu0 0.0
        %778 = vmatpush1.msra.mxu0 0.0
        %779 = vmatprep.subr.mxu0 0.0
        %780 = vmatpush1.msra.mxu0 0.0
        %781 = vmatprep.subr.mxu0 0.0
        %782 = vmatpush1.msra.mxu0 0.0
        %783 = vmatprep.subr.mxu0 0.0
        %784 = vmatpush1.msra.mxu0 0.0
        %785 = vmatprep.subr.mxu0 0.0
        %786 = vmatpush1.msra.mxu0 0.0
        %787 = vmatprep.subr.mxu0 0.0
        %788 = vmatpush1.msra.mxu0 0.0
        %789 = vmatprep.subr.mxu0 0.0
        %790 = vmatpush1.msra.mxu0 0.0
        %791 = vmatprep.subr.mxu0 0.0
        %792 = vmatpush1.msra.mxu0 0.0
        %793 = vmatprep.subr.mxu0 0.0
        %794 = vmatpush1.msra.mxu0 0.0
        %795 = vmatprep.subr.mxu0 0.0
        %796 = vmatpush1.msra.mxu0 0.0
        %797 = vmatprep.subr.mxu0 0.0
        %798 = vmatpush1.msra.mxu0 0.0
        %799 = vmatprep.subr.mxu0 0.0
        %800 = vmatpush1.msra.mxu0 0.0
        %801 = vmatprep.subr.mxu0 0.0
        %802 = vmatpush1.msra.mxu0 0.0
        %803 = vmatprep.subr.mxu0 0.0
        %804 = vmatpush1.msra.mxu0 0.0
        %805 = vmatprep.subr.mxu0 0.0
        %806 = vmatpush1.msra.mxu0 %v770
        %807 = vmatprep.subr.mxu0 0.0
        %808 = vmatpush2.msra.mxu0 0.0
        %809 = vmatprep.subr.mxu0 0.0
        %810 = vmatpush2.msra.mxu0 0.0
        %811 = vmatprep.subr.mxu0 0.0
        %812 = vmatpush2.msra.mxu0 0.0
        %813 = vmatprep.subr.mxu0 0.0
        %814 = vmatpush2.msra.mxu0 0.0
        %815 = vmatprep.subr.mxu0 0.0
        %816 = vmatpush2.msra.mxu0 0.0
        %817 = vmatprep.subr.mxu0 0.0
        %818 = vmatpush2.msra.mxu0 0.0
        %819 = vmatprep.subr.mxu0 0.0
        %820 = vmatpush2.msra.mxu0 0.0
        %821 = vmatprep.subr.mxu0 0.0
        %822 = vmatpush2.msra.mxu0 0.0
        %823 = vmatprep.subr.mxu0 0.0
        %824 = vmatpush2.msra.mxu0 0.0
        %825 = vmatprep.subr.mxu0 0.0
        %826 = vmatpush2.msra.mxu0 0.0
        %827 = vmatprep.subr.mxu0 0.0
        %828 = vmatpush2.msra.mxu0 0.0
        %829 = vmatprep.subr.mxu0 0.0
        %830 = vmatpush2.msra.mxu0 0.0
        %831 = vmatprep.subr.mxu0 0.0
        %832 = vmatpush2.msra.mxu0 0.0
        %833 = vmatprep.subr.mxu0 0.0
        %834 = vmatpush2.msra.mxu0 0.0
        %835 = vmatprep.subr.mxu0 0.0
        %836 = vmatpush2.msra.mxu0 0.0
        %837 = vmatprep.subr.mxu0 0.0
        %838 = vmatpush2.msra.mxu0 0.0
        %839 = vmatprep.mubr.f32.mxu0 0.0
        %840 = vmatmul.mubr.f32.gmra.mxu0 %v773
        %v841 = vpop.f32.mrf.mxu0
        %v842 = vadd.f32 0.0, %v841
        %v843 = vpop.f32.mrf.mxu0
        %844 = vdwg.mxu0
        %845 = vrot.lane.b32.xlu0 %v411, 64
        %v846 = vpop.permute.xlu0 %845
        %v849 = vsel %vm418, %v766, 0
        %851 = vmatprep.subr.mxu0 0.0
        %852 = vmatpush1.msra.mxu0 0.0
        %853 = vmatprep.subr.mxu0 0.0
        %854 = vmatpush1.msra.mxu0 0.0
        %855 = vmatprep.subr.mxu0 0.0
        %856 = vmatpush1.msra.mxu0 0.0
        %857 = vmatprep.subr.mxu0 0.0
        %858 = vmatpush1.msra.mxu0 0.0
        %859 = vmatprep.subr.mxu0 0.0
        %860 = vmatpush1.msra.mxu0 0.0
        %861 = vmatprep.subr.mxu0 0.0
        %862 = vmatpush1.msra.mxu0 0.0
        %863 = vmatprep.subr.mxu0 0.0
        %864 = vmatpush1.msra.mxu0 0.0
        %865 = vmatprep.subr.mxu0 0.0
        %866 = vmatpush1.msra.mxu0 0.0
        %867 = vmatprep.subr.mxu0 0.0
        %868 = vmatpush1.msra.mxu0 0.0
        %869 = vmatprep.subr.mxu0 0.0
        %870 = vmatpush1.msra.mxu0 0.0
        %871 = vmatprep.subr.mxu0 0.0
        %872 = vmatpush1.msra.mxu0 0.0
        %873 = vmatprep.subr.mxu0 0.0
        %874 = vmatpush1.msra.mxu0 0.0
        %875 = vmatprep.subr.mxu0 0.0
        %876 = vmatpush1.msra.mxu0 0.0
        %877 = vmatprep.subr.mxu0 0.0
        %878 = vmatpush1.msra.mxu0 0.0
        %879 = vmatprep.subr.mxu0 0.0
        %880 = vmatpush1.msra.mxu0 0.0
        %881 = vmatprep.subr.mxu0 0.0
        %882 = vmatpush1.msra.mxu0 %v846
        %883 = vmatprep.subr.mxu0 0.0
        %884 = vmatpush2.msra.mxu0 0.0
        %885 = vmatprep.subr.mxu0 0.0
        %886 = vmatpush2.msra.mxu0 0.0
        %887 = vmatprep.subr.mxu0 0.0
        %888 = vmatpush2.msra.mxu0 0.0
        %889 = vmatprep.subr.mxu0 0.0
        %890 = vmatpush2.msra.mxu0 0.0
        %891 = vmatprep.subr.mxu0 0.0
        %892 = vmatpush2.msra.mxu0 0.0
        %893 = vmatprep.subr.mxu0 0.0
        %894 = vmatpush2.msra.mxu0 0.0
        %895 = vmatprep.subr.mxu0 0.0
        %896 = vmatpush2.msra.mxu0 0.0
        %897 = vmatprep.subr.mxu0 0.0
        %898 = vmatpush2.msra.mxu0 0.0
        %899 = vmatprep.subr.mxu0 0.0
        %900 = vmatpush2.msra.mxu0 0.0
        %901 = vmatprep.subr.mxu0 0.0
        %902 = vmatpush2.msra.mxu0 0.0
        %903 = vmatprep.subr.mxu0 0.0
        %904 = vmatpush2.msra.mxu0 0.0
        %905 = vmatprep.subr.mxu0 0.0
        %906 = vmatpush2.msra.mxu0 0.0
        %907 = vmatprep.subr.mxu0 0.0
        %908 = vmatpush2.msra.mxu0 0.0
        %909 = vmatprep.subr.mxu0 0.0
        %910 = vmatpush2.msra.mxu0 0.0
        %911 = vmatprep.subr.mxu0 0.0
        %912 = vmatpush2.msra.mxu0 0.0
        %913 = vmatprep.subr.mxu0 0.0
        %914 = vmatpush2.msra.mxu0 0.0
        %915 = vmatprep.mubr.f32.mxu0 0.0
        %916 = vmatmul.mubr.f32.gmra.mxu0 %v849
        %v917 = vpop.f32.mrf.mxu0
        %v918 = vadd.f32 0.0, %v917
        %v919 = vpop.f32.mrf.mxu0
        %920 = vdwg.mxu0
        %921 = vrot.lane.b32.xlu0 %v413, 64
        %v922 = vpop.permute.xlu0 %921
        %v925 = vsel %vm418, %v767, 0
        %927 = vmatprep.subr.mxu0 0.0
        %928 = vmatpush1.msra.mxu0 0.0
        %929 = vmatprep.subr.mxu0 0.0
        %930 = vmatpush1.msra.mxu0 0.0
        %931 = vmatprep.subr.mxu0 0.0
        %932 = vmatpush1.msra.mxu0 0.0
        %933 = vmatprep.subr.mxu0 0.0
        %934 = vmatpush1.msra.mxu0 0.0
        %935 = vmatprep.subr.mxu0 0.0
        %936 = vmatpush1.msra.mxu0 0.0
        %937 = vmatprep.subr.mxu0 0.0
        %938 = vmatpush1.msra.mxu0 0.0
        %939 = vmatprep.subr.mxu0 0.0
        %940 = vmatpush1.msra.mxu0 0.0
        %941 = vmatprep.subr.mxu0 0.0
        %942 = vmatpush1.msra.mxu0 0.0
        %943 = vmatprep.subr.mxu0 0.0
        %944 = vmatpush1.msra.mxu0 0.0
        %945 = vmatprep.subr.mxu0 0.0
        %946 = vmatpush1.msra.mxu0 0.0
        %947 = vmatprep.subr.mxu0 0.0
        %948 = vmatpush1.msra.mxu0 0.0
        %949 = vmatprep.subr.mxu0 0.0
        %950 = vmatpush1.msra.mxu0 0.0
        %951 = vmatprep.subr.mxu0 0.0
        %952 = vmatpush1.msra.mxu0 0.0
        %953 = vmatprep.subr.mxu0 0.0
        %954 = vmatpush1.msra.mxu0 0.0
        %955 = vmatprep.subr.mxu0 0.0
        %956 = vmatpush1.msra.mxu0 0.0
        %957 = vmatprep.subr.mxu0 0.0
        %958 = vmatpush1.msra.mxu0 %v922
        %959 = vmatprep.subr.mxu0 0.0
        %960 = vmatpush2.msra.mxu0 0.0
        %961 = vmatprep.subr.mxu0 0.0
        %962 = vmatpush2.msra.mxu0 0.0
        %963 = vmatprep.subr.mxu0 0.0
        %964 = vmatpush2.msra.mxu0 0.0
        %965 = vmatprep.subr.mxu0 0.0
        %966 = vmatpush2.msra.mxu0 0.0
        %967 = vmatprep.subr.mxu0 0.0
        %968 = vmatpush2.msra.mxu0 0.0
        %969 = vmatprep.subr.mxu0 0.0
        %970 = vmatpush2.msra.mxu0 0.0
        %971 = vmatprep.subr.mxu0 0.0
        %972 = vmatpush2.msra.mxu0 0.0
        %973 = vmatprep.subr.mxu0 0.0
        %974 = vmatpush2.msra.mxu0 0.0
        %975 = vmatprep.subr.mxu0 0.0
        %976 = vmatpush2.msra.mxu0 0.0
        %977 = vmatprep.subr.mxu0 0.0
        %978 = vmatpush2.msra.mxu0 0.0
        %979 = vmatprep.subr.mxu0 0.0
        %980 = vmatpush2.msra.mxu0 0.0
        %981 = vmatprep.subr.mxu0 0.0
        %982 = vmatpush2.msra.mxu0 0.0
        %983 = vmatprep.subr.mxu0 0.0
        %984 = vmatpush2.msra.mxu0 0.0
        %985 = vmatprep.subr.mxu0 0.0
        %986 = vmatpush2.msra.mxu0 0.0
        %987 = vmatprep.subr.mxu0 0.0
        %988 = vmatpush2.msra.mxu0 0.0
        %989 = vmatprep.subr.mxu0 0.0
        %990 = vmatpush2.msra.mxu0 0.0
        %991 = vmatprep.mubr.f32.mxu0 0.0
        %992 = vmatmul.mubr.f32.gmra.mxu0 %v925
        %v993 = vpop.f32.mrf.mxu0
        %v994 = vadd.f32 0.0, %v993
        %v995 = vpop.f32.mrf.mxu0
        %996 = vdwg.mxu0
        %997 = vrot.lane.b32.xlu0 %v415, 64
        %v998 = vpop.permute.xlu0 %997
        %v1001 = vsel %vm418, %v768, 0
        %1003 = vmatprep.subr.mxu0 0.0
        %1004 = vmatpush1.msra.mxu0 0.0
        %1005 = vmatprep.subr.mxu0 0.0
        %1006 = vmatpush1.msra.mxu0 0.0
        %1007 = vmatprep.subr.mxu0 0.0
        %1008 = vmatpush1.msra.mxu0 0.0
        %1009 = vmatprep.subr.mxu0 0.0
        %1010 = vmatpush1.msra.mxu0 0.0
        %1011 = vmatprep.subr.mxu0 0.0
        %1012 = vmatpush1.msra.mxu0 0.0
        %1013 = vmatprep.subr.mxu0 0.0
        %1014 = vmatpush1.msra.mxu0 0.0
        %1015 = vmatprep.subr.mxu0 0.0
        %1016 = vmatpush1.msra.mxu0 0.0
        %1017 = vmatprep.subr.mxu0 0.0
        %1018 = vmatpush1.msra.mxu0 0.0
        %1019 = vmatprep.subr.mxu0 0.0
        %1020 = vmatpush1.msra.mxu0 0.0
        %1021 = vmatprep.subr.mxu0 0.0
        %1022 = vmatpush1.msra.mxu0 0.0
        %1023 = vmatprep.subr.mxu0 0.0
        %1024 = vmatpush1.msra.mxu0 0.0
        %1025 = vmatprep.subr.mxu0 0.0
        %1026 = vmatpush1.msra.mxu0 0.0
        %1027 = vmatprep.subr.mxu0 0.0
        %1028 = vmatpush1.msra.mxu0 0.0
        %1029 = vmatprep.subr.mxu0 0.0
        %1030 = vmatpush1.msra.mxu0 0.0
        %1031 = vmatprep.subr.mxu0 0.0
        %1032 = vmatpush1.msra.mxu0 0.0
        %1033 = vmatprep.subr.mxu0 0.0
        %1034 = vmatpush1.msra.mxu0 %v998
        %1035 = vmatprep.subr.mxu0 0.0
        %1036 = vmatpush2.msra.mxu0 0.0
        %1037 = vmatprep.subr.mxu0 0.0
        %1038 = vmatpush2.msra.mxu0 0.0
        %1039 = vmatprep.subr.mxu0 0.0
        %1040 = vmatpush2.msra.mxu0 0.0
        %1041 = vmatprep.subr.mxu0 0.0
        %1042 = vmatpush2.msra.mxu0 0.0
        %1043 = vmatprep.subr.mxu0 0.0
        %1044 = vmatpush2.msra.mxu0 0.0
        %1045 = vmatprep.subr.mxu0 0.0
        %1046 = vmatpush2.msra.mxu0 0.0
        %1047 = vmatprep.subr.mxu0 0.0
        %1048 = vmatpush2.msra.mxu0 0.0
        %1049 = vmatprep.subr.mxu0 0.0
        %1050 = vmatpush2.msra.mxu0 0.0
        %1051 = vmatprep.subr.mxu0 0.0
        %1052 = vmatpush2.msra.mxu0 0.0
        %1053 = vmatprep.subr.mxu0 0.0
        %1054 = vmatpush2.msra.mxu0 0.0
        %1055 = vmatprep.subr.mxu0 0.0
        %1056 = vmatpush2.msra.mxu0 0.0
        %1057 = vmatprep.subr.mxu0 0.0
        %1058 = vmatpush2.msra.mxu0 0.0
        %1059 = vmatprep.subr.mxu0 0.0
        %1060 = vmatpush2.msra.mxu0 0.0
        %1061 = vmatprep.subr.mxu0 0.0
        %1062 = vmatpush2.msra.mxu0 0.0
        %1063 = vmatprep.subr.mxu0 0.0
        %1064 = vmatpush2.msra.mxu0 0.0
        %1065 = vmatprep.subr.mxu0 0.0
        %1066 = vmatpush2.msra.mxu0 0.0
        %1067 = vmatprep.mubr.f32.mxu0 0.0
        %1068 = vmatmul.mubr.f32.gmra.mxu0 %v1001
        %v1069 = vpop.f32.mrf.mxu0
        %v1070 = vadd.f32 0.0, %v1069
        %v1071 = vpop.f32.mrf.mxu0
        %1072 = vdwg.mxu0
        %1074 = vrot.lane.b32.xlu0 %v918, 8
        %v1075 = vpop.permute.xlu0 %1074
        %1078 = vrot.lane.b32.xlu0 %v994, 16
        %v1079 = vpop.permute.xlu0 %1078
        %1082 = vrot.lane.b32.xlu0 %v1070, 24
        %v1083 = vpop.permute.xlu0 %1082
        %v1085 = vsel %vm418, %v842, %v1075
        %vm1086 = vcmask 130048
        %v1087 = vsel %vm1086, %v1085, %v1079
        %vm1088 = vcmask 195584
        %v1089 = vsel %vm1088, %v1087, %v1083
        %v1090 = vld [vmem:[#allocation7] sm:$0xff]
        %v1091 = vld [vmem:[#allocation7 + $0x8] sm:$0xff]
        %v1092 = vld [vmem:[#allocation7 + $0x10] sm:$0xff]
        %v1093 = vld [vmem:[#allocation7 + $0x18] sm:$0xff]
        %v1094 = vld [vmem:[%s4] sm:$0x1]
        %v1096 = vlaneseq
        %v1097 = vshrl.u32 %v1096, 7
        %v1098 = vsub.s32 0, %v1097
        %v1099 = vrot.slane %v1094, %v1098
        %v1102 = vsel %vm335, %v1089, 0
        %1104 = vmatprep.subr.mxu0 0.0
        %1105 = vmatpush1.msra.mxu0 0.0
        %1106 = vmatprep.subr.mxu0 0.0
        %1107 = vmatpush1.msra.mxu0 0.0
        %1108 = vmatprep.subr.mxu0 0.0
        %1109 = vmatpush1.msra.mxu0 0.0
        %1110 = vmatprep.subr.mxu0 0.0
        %1111 = vmatpush1.msra.mxu0 0.0
        %1112 = vmatprep.subr.mxu0 0.0
        %1113 = vmatpush1.msra.mxu0 0.0
        %1114 = vmatprep.subr.mxu0 0.0
        %1115 = vmatpush1.msra.mxu0 0.0
        %1116 = vmatprep.subr.mxu0 0.0
        %1117 = vmatpush1.msra.mxu0 0.0
        %1118 = vmatprep.subr.mxu0 0.0
        %1119 = vmatpush1.msra.mxu0 0.0
        %1120 = vmatprep.subr.mxu0 0.0
        %1121 = vmatpush1.msra.mxu0 0.0
        %1122 = vmatprep.subr.mxu0 0.0
        %1123 = vmatpush1.msra.mxu0 0.0
        %1124 = vmatprep.subr.mxu0 0.0
        %1125 = vmatpush1.msra.mxu0 0.0
        %1126 = vmatprep.subr.mxu0 0.0
        %1127 = vmatpush1.msra.mxu0 0.0
        %1128 = vmatprep.subr.mxu0 0.0
        %1129 = vmatpush1.msra.mxu0 %v1093
        %1130 = vmatprep.subr.mxu0 0.0
        %1131 = vmatpush1.msra.mxu0 %v1092
        %1132 = vmatprep.subr.mxu0 0.0
        %1133 = vmatpush1.msra.mxu0 %v1091
        %1134 = vmatprep.subr.mxu0 0.0
        %1135 = vmatpush1.msra.mxu0 %v1090
        %1136 = vmatprep.subr.mxu0 0.0
        %1137 = vmatpush2.msra.mxu0 0.0
        %1138 = vmatprep.subr.mxu0 0.0
        %1139 = vmatpush2.msra.mxu0 0.0
        %1140 = vmatprep.subr.mxu0 0.0
        %1141 = vmatpush2.msra.mxu0 0.0
        %1142 = vmatprep.subr.mxu0 0.0
        %1143 = vmatpush2.msra.mxu0 0.0
        %1144 = vmatprep.subr.mxu0 0.0
        %1145 = vmatpush2.msra.mxu0 0.0
        %1146 = vmatprep.subr.mxu0 0.0
        %1147 = vmatpush2.msra.mxu0 0.0
        %1148 = vmatprep.subr.mxu0 0.0
        %1149 = vmatpush2.msra.mxu0 0.0
        %1150 = vmatprep.subr.mxu0 0.0
        %1151 = vmatpush2.msra.mxu0 0.0
        %1152 = vmatprep.subr.mxu0 0.0
        %1153 = vmatpush2.msra.mxu0 0.0
        %1154 = vmatprep.subr.mxu0 0.0
        %1155 = vmatpush2.msra.mxu0 0.0
        %1156 = vmatprep.subr.mxu0 0.0
        %1157 = vmatpush2.msra.mxu0 0.0
        %1158 = vmatprep.subr.mxu0 0.0
        %1159 = vmatpush2.msra.mxu0 0.0
        %1160 = vmatprep.subr.mxu0 0.0
        %1161 = vmatpush2.msra.mxu0 0.0
        %1162 = vmatprep.subr.mxu0 0.0
        %1163 = vmatpush2.msra.mxu0 0.0
        %1164 = vmatprep.subr.mxu0 0.0
        %1165 = vmatpush2.msra.mxu0 0.0
        %1166 = vmatprep.subr.mxu0 0.0
        %1167 = vmatpush2.msra.mxu0 0.0
        %1168 = vmatprep.mubr.f32.mxu0 0.0
        %1169 = vmatmul.mubr.f32.gmra.mxu0 %v1102
        %v1170 = vpop.f32.mrf.mxu0
        %v1171 = vadd.f32 %v1099, %v1170
        %v1172 = vpop.f32.mrf.mxu0
        %1173 = vdwg.mxu0
        %v1174 = vadd.f32 %v323, %v1171
        %v1175 = vsel %vm335, %v1174, 0.0
        %1176 = vadd.xlane.f32.xlu0 %v1175
        %v1177 = vpop.xlane.xlu0 %1176
        %v1178 = vrcp.pop 32.0
        %v1179 = vmul.f32 %v1177, %v1178
        %v1180 = vsub.f32 %v1174, %v1179
        %v1181 = vmul.f32 %v1180, %v1180
        %v1182 = vsel %vm335, %v1181, 0.0
        %1183 = vadd.xlane.f32.xlu0 %v1182
        %v1184 = vpop.xlane.xlu0 %1183
        %v1185 = vmul.f32 %v1184, %v1178
        %v1186 = vadd.f32 %v1185, 1e-05
        %v1187 = vrsqrt.pop %v1186
        %v1188 = vmul.f32 %v1180, %v1187
        %v1189 = vld [vmem:[%s5] sm:$0x1]
        %v1191 = vlaneseq
        %v1192 = vshrl.u32 %v1191, 7
        %v1193 = vsub.s32 0, %v1192
        %v1194 = vrot.slane %v1189, %v1193
        %v1196 = vmul.f32 %v1188, %v1194
        %v1197 = vld [vmem:[%s6] sm:$0x1]
        %v1199 = vlaneseq
        %v1200 = vshrl.u32 %v1199, 7
        %v1201 = vsub.s32 0, %v1200
        %v1202 = vrot.slane %v1197, %v1201
        %v1204 = vadd.f32 %v1196, %v1202
        %1205 = vst.msk [vmem:[%s322] sm:$0xff] %vm335, %v1204
        %s1206 = sand.u32 %s185, 1
        %s1207 = scalar_lea.sflag [#allocation4], %s1206
        %s1208 = sand.u32 %s185, 1
        %s1209 = smul.addr %s1208, 8
        %s1210 = scalar_lea.vmem [#allocation8], %s1209
        // Predicated region
        $region61: #{tpu_custom_call.1} parent=47 // pred_check
          %p1211 = pneg %p195
        $region62: #{tpu_custom_call.1} parent=47 // pred_check_branch
          %1213 = sbr.rel (%p1211) target = $region64
        $region63: #{tpu_custom_call.1} parent=47 // pred_region
          %s1215 = ssub.s32 128, 128
          %1216 = vsyncadd %s1207, %s1215
          %s1217 = smul.addr %s25, 128
          %s1218 = scalar_lea.hbm %s7, %s1217
          %s1220 = sshll.u32 %s1210, 4
          %s1221 = int_to_ptr.vmem [resolvable:$true] %s1220
          %1223 = dma.vmem_to_hbm [thread:$0]  %s1221, 128, %s1218, %s1207
        $region64: #{tpu_custom_call.1} parent=47 // pred_fallthru
          _
      $region48: #{tpu_custom_call.1} parent=5 // pred_fallthru
        _
      %p1224 = scmp.le.s32.totalorder 2, %s20
      // Predicated region
      $region65: #{tpu_custom_call.1} parent=5 // pred_check
        %p1225 = pneg %p1224
      $region66: #{tpu_custom_call.1} parent=5 // pred_check_branch
        %1227 = sbr.rel (%p1225) target = $region68
      $region67: #{tpu_custom_call.1} parent=5 // pred_region
        %s1228 = ssub.s32 %s20, 2
        // Predicated region
        $region69: #{tpu_custom_call.1} parent=67 // pred_check
          %p1229 = pneg %p201
        $region70: #{tpu_custom_call.1} parent=67 // pred_check_branch
          %1231 = sbr.rel (%p1229) target = $region72
        $region71: #{tpu_custom_call.1} parent=67 // pred_region
          %s1232 = sand.u32 %s186, 1
          %s1233 = scalar_lea.sflag [#allocation4], %s1232
          %s1234 = sand.u32 %s186, 1
          %s1235 = smul.addr %s1234, 8
          %s1236 = scalar_lea.vmem [#allocation8], %s1235
          %1237 = dma.done %s1233, 128
        $region72: #{tpu_custom_call.1} parent=67 // pred_fallthru
          _
      $region68: #{tpu_custom_call.1} parent=5 // pred_fallthru
        _
    $region6: #{tpu_custom_call.1} parent=1 // loop_footer
      %s24 = sadd.s32 1, %s20
    $region7: #{tpu_custom_call.1} parent=1 // loop_footer_branch
      %19 = sbr.rel target = $region3
    $region8: #{tpu_custom_call.1} parent=1 // loop_exit
      _
    %1238 = vsyncpa [#allocation3], 1
    %s1239 = scalar_lea.sflag [#allocation3], 1
    %1240 = vsyncpa %s1239, 1
    %1241 = vsyncpa [#allocation6], 1
    %1242 = vsyncpa [#allocation4], 1
    %s1243 = scalar_lea.sflag [#allocation4], 1
    %1244 = vsyncpa %s1243, 1

</llo_original>
